<compile_context>
chip_gen: v7x
topology: tpu7x:2x2x1
jax: 0.10.0
libtpu: 0.0.40
codegen_flags: <defaults>
</compile_context>

<pallas_src>
import math

import jax
import jax.numpy as jnp
from jax.experimental import pallas as pl
from jax.experimental.pallas import tpu as pltpu


def distmult_kernel(idx_ref, zt_ref, rel_ref, out_ref):
    # idx_ref : (3, TE) int32 — rows: src node, dst node, relation id
    # zt_ref  : (H, N)  f32   — node embeddings, transposed
    # rel_ref : (R, H)  f32   — relation embeddings, natural layout
    # out_ref : (1, TE) f32   — lane-dense per-edge scores
    idx = idx_ref[...]
    te = idx_ref.shape[1]
    n = zt_ref.shape[1]
    r = rel_ref.shape[0]

    # --- Fused endpoint gather: one (H, N) @ (N, 2*TE) one-hot matmul -------
    sel = jnp.concatenate([idx[0:1, :], idx[1:2, :]], axis=1)        # (1, 2*TE)
    node_ids = jax.lax.broadcasted_iota(jnp.int32, (n, 2 * te), 0)   # (N, 2*TE)
    onehot_z = (node_ids == sel).astype(zt_ref.dtype)
    x12t = jnp.dot(zt_ref[...], onehot_z,
                   preferred_element_type=jnp.float32)               # (H, 2*TE)
    x1t = x12t[:, :te]                                               # (H, TE)
    x2t = x12t[:, te:]                                               # (H, TE)

    # --- DistMult score: reduction over H done on the MXU -------------------
    p = x1t * x2t                                                    # (H, TE)
    s_all = jnp.dot(rel_ref[...], p,
                    preferred_element_type=jnp.float32)              # (R, TE)

    # Select each edge's relation row: masked reduce over R sublanes.
    rel_ids = jax.lax.broadcasted_iota(jnp.int32, (r, te), 0)        # (R, TE)
    hit = rel_ids == idx[2:3, :]
    out_ref[...] = jnp.sum(jnp.where(hit, s_all, 0.0),
                           axis=0, keepdims=True).astype(out_ref.dtype)


def distmult_decoder(z, rel_emb, edge_index, edge_type, *, tile_e=512):
    """z: (N, H) f32, rel_emb: (R, H) f32, edge_index: (2, E) int,
    edge_type: (E,) int.  Returns (E,) f32 DistMult scores."""
    n, h = z.shape
    r = rel_emb.shape[0]
    e = edge_index.shape[1]

    # Transposed node table: feature axis on sublanes, node axis on lanes.
    zt = jnp.asarray(z, jnp.float32).T                      # (H, N)
    rel = jnp.asarray(rel_emb, jnp.float32)                 # (R, H) natural

    # Lane-dense index block: rows = (src, dst, relation).
    idx = jnp.concatenate(
        [jnp.asarray(edge_index, jnp.int32).reshape(2, e),
         jnp.asarray(edge_type, jnp.int32).reshape(1, e)], axis=0)  # (3, E)

    # Pad the edge axis to a multiple of tile_e (pads with valid index 0);
    # padded scores are sliced off below.
    e_pad = tile_e * pl.cdiv(e, tile_e)
    if e_pad != e:
        idx = jnp.pad(idx, ((0, 0), (0, e_pad - e)))

    grid = (e_pad // tile_e,)

    # Advisory cost hint so XLA schedules around the wrapper-side transpose/pad.
    flops = (4 * h * n + 2 * r * h + h + 2 * r) * e_pad
    bytes_accessed = idx.size * 4 + zt.size * 4 + rel.size * 4 + e_pad * 4

    out = pl.pallas_call(
        distmult_kernel,
        out_shape=jax.ShapeDtypeStruct((1, e_pad), jnp.float32),
        grid_spec=pltpu.PrefetchScalarGridSpec(
            num_scalar_prefetch=0,
            grid=grid,
            in_specs=[
                pl.BlockSpec((3, tile_e), lambda i: (0, i)),   # edge indices
                pl.BlockSpec((h, n), lambda i: (0, 0)),        # z^T (grid-invariant)
                pl.BlockSpec((r, h), lambda i: (0, 0)),        # rel_emb (grid-invariant)
            ],
            out_specs=pl.BlockSpec((1, tile_e), lambda i: (0, i)),
        ),
        compiler_params=pltpu.CompilerParams(
            dimension_semantics=("parallel",)),
        cost_estimate=pl.CostEstimate(flops=flops, transcendentals=0,
                                      bytes_accessed=bytes_accessed),
    )(idx, zt, rel)

    return out[0, :e]


def reference_forward(z, rel_emb, edge_index, edge_type):
    x1 = z[edge_index[0]]
    x2 = z[edge_index[1]]
    rel = rel_emb[edge_type]
    return jnp.sum(x1 * rel * x2, axis=1)


if __name__ == "__main__":
    key = jax.random.PRNGKey(0)
    k_z, k_rel, k_src, k_dst, k_t = jax.random.split(key, 5)

    # Small shapes consistent with the module's forward.
    N, H, R, E = 64, 32, 8, 1000   # nodes, hidden, relations, edges

    z = jax.random.normal(k_z, (N, H), dtype=jnp.float32)
    std = math.sqrt(2.0 / (R + H))                          # xavier_normal_
    rel_emb = std * jax.random.normal(k_rel, (R, H), dtype=jnp.float32)

    edge_index = jnp.stack(
        [jax.random.randint(k_src, (E,), 0, N, dtype=jnp.int32),
         jax.random.randint(k_dst, (E,), 0, N, dtype=jnp.int32)], axis=0)
    edge_type = jax.random.randint(k_t, (E,), 0, R, dtype=jnp.int32)

    out = distmult_decoder(z, rel_emb, edge_index, edge_type, tile_e=512)
    out = jax.block_until_ready(out)

    ref = reference_forward(z, rel_emb, edge_index, edge_type)
    assert out.shape == (E,)
    assert jnp.allclose(out, ref, atol=1e-4, rtol=1e-3), "mismatch vs. reference"

    print("KERNEL_OK")
</pallas_src>

<mosaic_0001>
module attributes {stable_mosaic.version = 11 : i64} {
  func.func @distmult_kernel(%arg0: i32, %arg1: memref<3x512xi32, #tpu.memory_space<vmem>>, %arg2: memref<32x64xf32, #tpu.memory_space<vmem>>, %arg3: memref<8x32xf32, #tpu.memory_space<vmem>>, %arg4: memref<1x512xf32, #tpu.memory_space<vmem>>) attributes {dimension_semantics = [#tpu.dimension_semantics<parallel>], iteration_bounds = array<i64: 2>, scalar_prefetch = 0 : i64, scratch_operands = 0 : i64, tpu.core_type = #tpu.core_type<tc>, window_params = [{transform_indices = @transform_0, window_bounds = array<i64: 3, 512>}, {pipeline_mode = #tpu.pipeline_mode<synchronous>, transform_indices = @transform_1, window_bounds = array<i64: 32, 64>}, {pipeline_mode = #tpu.pipeline_mode<synchronous>, transform_indices = @transform_2, window_bounds = array<i64: 8, 32>}, {transform_indices = @transform_3, window_bounds = array<i64: 1, 512>}]} {
    %c0 = arith.constant 0 : index
    %c0_0 = arith.constant 0 : index
    %0 = vector.load %arg1[%c0, %c0_0] : memref<3x512xi32, #tpu.memory_space<vmem>>, vector<3x512xi32>
    %1 = vector.extract_strided_slice %0 {offsets = [0, 0], sizes = [1, 512], strides = [1, 1]} : vector<3x512xi32> to vector<1x512xi32>
    %2 = vector.extract_strided_slice %0 {offsets = [1, 0], sizes = [1, 512], strides = [1, 1]} : vector<3x512xi32> to vector<1x512xi32>
    %3 = tpu.concatenate %1, %2 in 1 : vector<1x512xi32>, vector<1x512xi32> -> vector<1x1024xi32>
    %4 = tpu.iota {dimensions = array<i32: 0>} : vector<64x1024xi32>
    %5 = vector.broadcast %3 : vector<1x1024xi32> to vector<64x1024xi32>
    %6 = arith.cmpi eq, %4, %5 : vector<64x1024xi32>
    %7 = arith.extui %6 : vector<64x1024xi1> to vector<64x1024xi32>
    %8 = arith.sitofp %7 : vector<64x1024xi32> to vector<64x1024xf32>
    %c0_1 = arith.constant 0 : index
    %c0_2 = arith.constant 0 : index
    %9 = vector.load %arg2[%c0_1, %c0_2] : memref<32x64xf32, #tpu.memory_space<vmem>>, vector<32x64xf32>
    %cst = arith.constant dense<0.000000e+00> : vector<32x1024xf32>
    %10 = tpu.matmul %9, %8, %cst {dimension_numbers = #tpu.dot_dimension_numbers<[1], [0], [0], [1], [0, 0, 1, 1], [], []>} : vector<32x64xf32>, vector<64x1024xf32>, vector<32x1024xf32> -> vector<32x1024xf32>
    %11 = vector.extract_strided_slice %10 {offsets = [0, 0], sizes = [32, 512], strides = [1, 1]} : vector<32x1024xf32> to vector<32x512xf32>
    %12 = vector.extract_strided_slice %10 {offsets = [0, 512], sizes = [32, 512], strides = [1, 1]} : vector<32x1024xf32> to vector<32x512xf32>
    %13 = arith.mulf %11, %12 : vector<32x512xf32>
    %c0_3 = arith.constant 0 : index
    %c0_4 = arith.constant 0 : index
    %14 = vector.load %arg3[%c0_3, %c0_4] : memref<8x32xf32, #tpu.memory_space<vmem>>, vector<8x32xf32>
    %cst_5 = arith.constant dense<0.000000e+00> : vector<8x512xf32>
    %15 = tpu.matmul %14, %13, %cst_5 {dimension_numbers = #tpu.dot_dimension_numbers<[1], [0], [0], [1], [0, 0, 1, 1], [], []>} : vector<8x32xf32>, vector<32x512xf32>, vector<8x512xf32> -> vector<8x512xf32>
    %16 = tpu.iota {dimensions = array<i32: 0>} : vector<8x512xi32>
    %17 = vector.extract_strided_slice %0 {offsets = [2, 0], sizes = [1, 512], strides = [1, 1]} : vector<3x512xi32> to vector<1x512xi32>
    %18 = vector.broadcast %17 : vector<1x512xi32> to vector<8x512xi32>
    %19 = arith.cmpi eq, %16, %18 : vector<8x512xi32>
    %cst_6 = arith.constant 0.000000e+00 : f32
    %20 = vector.broadcast %cst_6 : f32 to vector<8x512xf32>
    %21 = arith.select %19, %15, %20 : vector<8x512xi1>, vector<8x512xf32>
    %cst_7 = arith.constant dense<0.000000e+00> : vector<512xf32>
    %22 = vector.multi_reduction <add>, %21, %cst_7 [0] : vector<8x512xf32> to vector<512xf32>
    %23 = vector.shape_cast %22 : vector<512xf32> to vector<1x512xf32>
    %c0_8 = arith.constant 0 : index
    %c0_9 = arith.constant 0 : index
    %24 = vector.load %arg4[%c0_8, %c0_9] : memref<1x512xf32, #tpu.memory_space<vmem>>, vector<1x512xf32>
    tpu.vector_store %arg4[%c0_8, %c0_9], %23 {strides = array<i32>} : memref<1x512xf32, #tpu.memory_space<vmem>>, vector<1x512xf32>,
    return
  }
  func.func @transform_0(%arg0: i32) -> (i32, i32) {
    %c0_i32 = arith.constant 0 : i32
    %c0_i32_0 = arith.constant 0 : i32
    return %c0_i32, %arg0 : i32, i32
  }
  func.func @transform_1(%arg0: i32) -> (i32, i32) {
    %c0_i32 = arith.constant 0 : i32
    %c0_i32_0 = arith.constant 0 : i32
    %c0_i32_1 = arith.constant 0 : i32
    return %c0_i32, %c0_i32_0 : i32, i32
  }
  func.func @transform_2(%arg0: i32) -> (i32, i32) {
    %c0_i32 = arith.constant 0 : i32
    %c0_i32_0 = arith.constant 0 : i32
    %c0_i32_1 = arith.constant 0 : i32
    return %c0_i32, %c0_i32_0 : i32, i32
  }
  func.func @transform_3(%arg0: i32) -> (i32, i32) {
    %c0_i32 = arith.constant 0 : i32
    %c0_i32_0 = arith.constant 0 : i32
    return %c0_i32, %arg0 : i32, i32
  }
}

</mosaic_0001>

<llo_original>
// kernel: tpu_custom_call.1
$region0: #{tpu_custom_call.1}
  #allocation0 [shape = 'u32[]', space=smem, size = 0x4, offset = 0x4, fixed_abs, tag = 'smem constant byte address 0x4 - core index']
  #allocation1 [shape = 'u32[144,128]{1,0:T(1,128)}', space=vmem, size = 0x12000, scoped, tag = 'internal scratch']
  %s0 = inlined_call_operand.hbm [shape: s32[3,1024], index: 0, kind: input, shape index: {}]
  %s1 = inlined_call_operand.hbm [shape: f32[32,64], index: 1, kind: input, shape index: {}]
  %s2 = inlined_call_operand.hbm [shape: f32[8,32], index: 2, kind: input, shape index: {}]
  %s3 = inlined_call_operand.hbm [shape: f32[1,1024], index: 3, kind: output, shape index: {}]
  %s4 = sld [smem:[#allocation0]]
  $region57: #{tpu_custom_call.1} parent=0
    _
  %s6 = ssub.s32 1, %s4
  %s7 = scalar_select 0, %s6, %s4
  $region1: #{tpu_custom_call.1} parent=0
    #allocation2 [shape = 'u8[16384]{0}', space=vmem, size = 0x4000, scoped, tag = 'input window, operand 0']
    #allocation3 [shape = 's32[2]{0}', space=sflag, size = 0x8, scoped, tag = 'scoped memory for tpu_custom_call.1']
    #allocation4 [shape = 's32[2]{0}', space=sflag, size = 0x8, scoped, tag = 'scoped memory for tpu_custom_call.1']
    #allocation5 [shape = 'u8[16384]{0}', space=vmem, size = 0x4000, scoped, tag = 'input window, operand 1, single buffered']
    #allocation6 [shape = 's32[1]{0}', space=sflag, size = 0x4, scoped, tag = 'scoped memory for tpu_custom_call.1']
    #allocation7 [shape = 'u8[4096]{0}', space=vmem, size = 0x1000, scoped, tag = 'input window, operand 2, single buffered']
    #allocation8 [shape = 'u8[4096]{0}', space=vmem, size = 0x1000, scoped, tag = 'output window, operand 0']
    %8 = vsyncpa [#allocation3], 0
    %s9 = scalar_lea.sflag [#allocation3], 1
    %10 = vsyncpa %s9, 0
    %11 = vsyncpa [#allocation6], 0
    %12 = vsyncpa [#allocation4], 0
    %s13 = scalar_lea.sflag [#allocation4], 1
    %14 = vsyncpa %s13, 0
    loop: start=0, step=1, limit=4
    $region2: #{tpu_custom_call.1} parent=1 // loop_pre_header
      _
    $region3: #{tpu_custom_call.1} parent=1 // loop_header
      %s16 = sphi 0, %s20
      %p17 = scmp.ge.s32.totalorder %s16, 4
      %s26 = sphi 0, %s28
      %s29 = sphi 0, %s26
      %s30 = sphi 0, %s29
      %s46 = sphi 0, %s30
      %s50 = sphi 0, %s50
      %s52 = sphi 0, %s50
      %s53 = sphi 0, %s52
      %s67 = sphi 0, %s53
      %s71 = sphi 0, %s71
      %s73 = sphi 0, %s71
      %s74 = sphi 0, %s73
      %s88 = sphi 0, %s74
      %s94 = sphi 0, %s96
      %s97 = sphi 0, %s94
      %s98 = sphi 0, %s97
      %s114 = sphi 0, %s98
    $region4: #{tpu_custom_call.1} parent=1 // loop_header_branch
      %19 = sbr.rel (%p17) target = $region8
    $region5: #{tpu_custom_call.1} parent=1 // loop_body
      %s21 = ssub.s32 %s16, 1
      %s22 = ssub.s32 %s16, 2
      %s23 = sadd.s32 %s16, 1
      %s24 = ssub.s32 %s16, %s23
      %p25 = scmp.eq.s32.totalorder %s24, 0
      %s27 = sadd.s32 %s26, 1
      %s28 = scalar_select %p25, %s26, %s27
      %p31 = pneg %p25
      %p32 = scmp.eq.s32.totalorder %s16, 1
      %p33 = por %p31, %p32
      %p34 = scmp.ne.s32.totalorder %s26, %s29
      %p35 = scmp.eq.s32.totalorder %s16, 0
      %p36 = por %p34, %p35
      %p37 = scmp.ne.s32.totalorder %s26, %s29
      %p38 = scmp.eq.s32.totalorder %s21, 1
      %p39 = por %p37, %p38
      %p40 = scmp.ne.s32.totalorder %s29, %s30
      %p41 = scmp.eq.s32.totalorder %s21, 0
      %p42 = por %p40, %p41
      %p43 = scmp.ne.s32.totalorder %s29, %s30
      %p44 = scmp.eq.s32.totalorder %s22, 1
      %p45 = por %p43, %p44
      %p47 = scmp.ne.s32.totalorder %s30, %s46
      %p48 = scmp.eq.s32.totalorder %s22, 0
      %p49 = por %p47, %p48
      %s51 = sadd.s32 %s50, 1
      %p54 = scmp.eq.s32.totalorder %s16, 1
      %p55 = scmp.ne.s32.totalorder %s50, %s52
      %p56 = scmp.eq.s32.totalorder %s16, 0
      %p57 = por %p55, %p56
      %p58 = scmp.ne.s32.totalorder %s50, %s52
      %p59 = scmp.eq.s32.totalorder %s21, 1
      %p60 = por %p58, %p59
      %p61 = scmp.ne.s32.totalorder %s52, %s53
      %p62 = scmp.eq.s32.totalorder %s21, 0
      %p63 = por %p61, %p62
      %p64 = scmp.ne.s32.totalorder %s52, %s53
      %p65 = scmp.eq.s32.totalorder %s22, 1
      %p66 = por %p64, %p65
      %p68 = scmp.ne.s32.totalorder %s53, %s67
      %p69 = scmp.eq.s32.totalorder %s22, 0
      %p70 = por %p68, %p69
      %s72 = sadd.s32 %s71, 1
      %p75 = scmp.eq.s32.totalorder %s16, 1
      %p76 = scmp.ne.s32.totalorder %s71, %s73
      %p77 = scmp.eq.s32.totalorder %s16, 0
      %p78 = por %p76, %p77
      %p79 = scmp.ne.s32.totalorder %s71, %s73
      %p80 = scmp.eq.s32.totalorder %s21, 1
      %p81 = por %p79, %p80
      %p82 = scmp.ne.s32.totalorder %s73, %s74
      %p83 = scmp.eq.s32.totalorder %s21, 0
      %p84 = por %p82, %p83
      %p85 = scmp.ne.s32.totalorder %s73, %s74
      %p86 = scmp.eq.s32.totalorder %s22, 1
      %p87 = por %p85, %p86
      %p89 = scmp.ne.s32.totalorder %s74, %s88
      %p90 = scmp.eq.s32.totalorder %s22, 0
      %p91 = por %p89, %p90
      %s92 = ssub.s32 %s16, %s23
      %p93 = scmp.eq.s32.totalorder %s92, 0
      %s95 = sadd.s32 %s94, 1
      %s96 = scalar_select %p93, %s94, %s95
      %p99 = pneg %p93
      %p100 = scmp.eq.s32.totalorder %s16, 1
      %p101 = por %p99, %p100
      %p102 = scmp.ne.s32.totalorder %s94, %s97
      %p103 = scmp.eq.s32.totalorder %s16, 0
      %p104 = por %p102, %p103
      %p105 = scmp.ne.s32.totalorder %s94, %s97
      %p106 = scmp.eq.s32.totalorder %s21, 1
      %p107 = por %p105, %p106
      %p108 = scmp.ne.s32.totalorder %s97, %s98
      %p109 = scmp.eq.s32.totalorder %s21, 0
      %p110 = por %p108, %p109
      %p111 = scmp.ne.s32.totalorder %s97, %s98
      %p112 = scmp.eq.s32.totalorder %s22, 1
      %p113 = por %p111, %p112
      %p115 = scmp.ne.s32.totalorder %s98, %s114
      %p116 = scmp.eq.s32.totalorder %s22, 0
      %p117 = por %p115, %p116
      %p118 = scmp.le.s32.totalorder 1, %s16
      %p119 = scmp.lt.s32.totalorder %s16, 3
      %p120 = pnand %p118, %p119
      %p121 = pneg %p120
      // Predicated region
      $region9: #{tpu_custom_call.1} parent=5 // pred_check
        _
      $region10: #{tpu_custom_call.1} parent=5 // pred_check_branch
        %123 = sbr.rel (%p120) target = $region12
      $region11: #{tpu_custom_call.1} parent=5 // pred_region
        %s124 = ssub.s32 %s16, 1
        // Predicated region
        $region13: #{tpu_custom_call.1} parent=11 // pred_check
          %p125 = pneg %p63
        $region14: #{tpu_custom_call.1} parent=11 // pred_check_branch
          %127 = sbr.rel (%p125) target = $region16
        $region15: #{tpu_custom_call.1} parent=11 // pred_region
          %s129 = ssub.s32 512, 512
          %130 = vsyncadd [#allocation6], %s129
          %s131 = sshll.u32 [#allocation5], 4
          %s132 = int_to_ptr.vmem [resolvable:$true] %s131
          %137 = dma.hbm_to_vmem [thread:$0]  %s1, 512, %s132, [#allocation6], 128, 128, 8
        $region16: #{tpu_custom_call.1} parent=11 // pred_fallthru
          _
        // Predicated region
        $region17: #{tpu_custom_call.1} parent=11 // pred_check
          %p138 = pneg %p84
        $region18: #{tpu_custom_call.1} parent=11 // pred_check_branch
          %140 = sbr.rel (%p138) target = $region20
        $region19: #{tpu_custom_call.1} parent=11 // pred_region
          %s142 = ssub.s32 128, 128
          %143 = vsyncadd [#allocation6], %s142
          %s145 = sshll.u32 [#allocation7], 4
          %s146 = int_to_ptr.vmem [resolvable:$true] %s145
          %148 = dma.hbm_to_vmem [thread:$0]  %s2, 128, %s146, [#allocation6]
        $region20: #{tpu_custom_call.1} parent=11 // pred_fallthru
          _
      $region12: #{tpu_custom_call.1} parent=5 // pred_fallthru
        _
      %p149 = scmp.lt.s32.totalorder %s16, 2
      // Predicated region
      $region21: #{tpu_custom_call.1} parent=5 // pred_check
        %p150 = pneg %p149
      $region22: #{tpu_custom_call.1} parent=5 // pred_check_branch
        %152 = sbr.rel (%p150) target = $region24
      $region23: #{tpu_custom_call.1} parent=5 // pred_region
        // Predicated region
        $region25: #{tpu_custom_call.1} parent=23 // pred_check
          %p153 = pneg %p36
        $region26: #{tpu_custom_call.1} parent=23 // pred_check_branch
          %155 = sbr.rel (%p153) target = $region28
        $region27: #{tpu_custom_call.1} parent=23 // pred_region
          %s156 = sand.u32 %s26, 1
          %s157 = scalar_lea.sflag [#allocation3], %s156
          %s158 = sand.u32 %s26, 1
          %s159 = smul.addr %s158, 16
          %s160 = scalar_lea.vmem [#allocation2], %s159
          %s161 = smul.u32 4, %s16
          %s163 = ssub.s32 256, 256
          %164 = vsyncadd %s157, %s163
          %s165 = smul.addr %s161, 64
          %s166 = scalar_lea.hbm %s0, %s165
          %s168 = sshll.u32 %s160, 4
          %s169 = int_to_ptr.vmem [resolvable:$true] %s168
          %171 = dma.hbm_to_vmem [thread:$0]  %s166, 256, %s169, %s157
        $region28: #{tpu_custom_call.1} parent=23 // pred_fallthru
          _
      $region24: #{tpu_custom_call.1} parent=5 // pred_fallthru
        _
      %p172 = scmp.le.s32.totalorder 1, %s16
      %p173 = scmp.lt.s32.totalorder %s16, 3
      %p174 = pnand %p172, %p173
      %p175 = pneg %p174
      // Predicated region
      $region29: #{tpu_custom_call.1} parent=5 // pred_check
        _
      $region30: #{tpu_custom_call.1} parent=5 // pred_check_branch
        %177 = sbr.rel (%p174) target = $region32
      $region31: #{tpu_custom_call.1} parent=5 // pred_region
        %s178 = ssub.s32 %s16, 1
        %s179 = sand.u32 %s29, 1
        %s180 = scalar_lea.sflag [#allocation3], %s179
        %s181 = sand.u32 %s29, 1
        %s182 = smul.addr %s181, 16
        %s183 = scalar_lea.vmem [#allocation2], %s182
        // Predicated region
        $region33: #{tpu_custom_call.1} parent=31 // pred_check
          %p184 = pneg %p42
        $region34: #{tpu_custom_call.1} parent=31 // pred_check_branch
          %186 = sbr.rel (%p184) target = $region36
        $region35: #{tpu_custom_call.1} parent=31 // pred_region
          %187 = dma.done %s180, 256
        $region36: #{tpu_custom_call.1} parent=31 // pred_fallthru
          _
        // Predicated region
        $region37: #{tpu_custom_call.1} parent=31 // pred_check
          %p188 = pneg %p63
        $region38: #{tpu_custom_call.1} parent=31 // pred_check_branch
          %190 = sbr.rel (%p188) target = $region40
        $region39: #{tpu_custom_call.1} parent=31 // pred_region
          %191 = dma.done [#allocation6], 512
        $region40: #{tpu_custom_call.1} parent=31 // pred_fallthru
          _
        // Predicated region
        $region41: #{tpu_custom_call.1} parent=31 // pred_check
          %p192 = pneg %p84
        $region42: #{tpu_custom_call.1} parent=31 // pred_check_branch
          %194 = sbr.rel (%p192) target = $region44
        $region43: #{tpu_custom_call.1} parent=31 // pred_region
          %195 = dma.done [#allocation6], 128
        $region44: #{tpu_custom_call.1} parent=31 // pred_fallthru
          _
        %s196 = sand.u32 %s29, 1
        %s197 = scalar_lea.sflag [#allocation3], %s196
        %s198 = sand.u32 %s29, 1
        %s199 = smul.addr %s198, 16
        %s200 = scalar_lea.vmem [#allocation2], %s199
        %p201 = pneg %p42
        %p202 = pneg %p39
        %p203 = pneg %p63
        %p204 = pneg %p60
        %p205 = pneg %p84
        %p206 = pneg %p81
        %p207 = pneg %p110
        %p208 = pneg %p107
        %s209 = sand.u32 %s97, 1
        %s210 = scalar_lea.sflag [#allocation4], %s209
        %s211 = sand.u32 %s97, 1
        %s212 = smul.addr %s211, 4
        %s213 = scalar_lea.vmem [#allocation8], %s212
        %s214 = smul.u32 4, %s21
        %s215 = smul.u32 4, %s21
        %v216 = vld [vmem:[%s183] sm:$0x77]
        %v217 = vld [vmem:[%s183 + $0x8] sm:$0x77]
        %v218 = vlaneseq
        %v219 = vshrl.u32 %v218, 7
        %v220 = vsub.s32 0, %v219
        %v221 = vrot.slane %v216, %v220
        %v222 = vlaneseq
        %v223 = vshrl.u32 %v222, 7
        %v224 = vsub.s32 4, %v223
        %v225 = vrot.slane %v216, %v224
        %v226 = vlaneseq
        %v227 = vshrl.u32 %v226, 7
        %v228 = vsub.s32 0, %v227
        %v229 = vrot.slane %v217, %v228
        %v230 = vlaneseq
        %v231 = vshrl.u32 %v230, 7
        %v232 = vsub.s32 4, %v231
        %v233 = vrot.slane %v217, %v232
        %v234 = vlaneseq
        %v235 = vshrl.u32 %v234, 7
        %v236 = vsub.s32 1, %v235
        %v237 = vrot.slane %v216, %v236
        %v238 = vlaneseq
        %v239 = vshrl.u32 %v238, 7
        %v240 = vsub.s32 5, %v239
        %v241 = vrot.slane %v216, %v240
        %v242 = vlaneseq
        %v243 = vshrl.u32 %v242, 7
        %v244 = vsub.s32 1, %v243
        %v245 = vrot.slane %v217, %v244
        %v246 = vlaneseq
        %v247 = vshrl.u32 %v246, 7
        %v248 = vsub.s32 5, %v247
        %v249 = vrot.slane %v217, %v248
        %v250 = vlaneseq
        %v251 = vshrl.u32 %v250, 7
        %v252 = vadd.s32 %v251, 8
        %v253 = vadd.s32 %v251, 16
        %v254 = vadd.s32 %v251, 24
        %v255 = vadd.s32 %v251, 32
        %v256 = vadd.s32 %v251, 40
        %v257 = vadd.s32 %v251, 48
        %v258 = vadd.s32 %v251, 56
        %v259 = vlaneseq
        %v260 = vshrl.u32 %v259, 7
        %v261 = vsub.s32 0, %v260
        %v262 = vrot.slane %v221, %v261
        %v263 = vlaneseq
        %v264 = vshrl.u32 %v263, 7
        %v265 = vsub.s32 0, %v264
        %v266 = vrot.slane %v225, %v265
        %v267 = vlaneseq
        %v268 = vshrl.u32 %v267, 7
        %v269 = vsub.s32 0, %v268
        %v270 = vrot.slane %v229, %v269
        %v271 = vlaneseq
        %v272 = vshrl.u32 %v271, 7
        %v273 = vsub.s32 0, %v272
        %v274 = vrot.slane %v233, %v273
        %v275 = vlaneseq
        %v276 = vshrl.u32 %v275, 7
        %v277 = vsub.s32 0, %v276
        %v278 = vrot.slane %v237, %v277
        %v279 = vlaneseq
        %v280 = vshrl.u32 %v279, 7
        %v281 = vsub.s32 0, %v280
        %v282 = vrot.slane %v241, %v281
        %v283 = vlaneseq
        %v284 = vshrl.u32 %v283, 7
        %v285 = vsub.s32 0, %v284
        %v286 = vrot.slane %v245, %v285
        %v287 = vlaneseq
        %v288 = vshrl.u32 %v287, 7
        %v289 = vsub.s32 0, %v288
        %v290 = vrot.slane %v249, %v289
        %vm291 = vcmp.eq.s32.totalorder %v251, %v262
        %vm292 = vcmp.eq.s32.totalorder %v251, %v266
        %vm293 = vcmp.eq.s32.totalorder %v251, %v270
        %vm294 = vcmp.eq.s32.totalorder %v251, %v274
        %vm295 = vcmp.eq.s32.totalorder %v251, %v278
        %vm296 = vcmp.eq.s32.totalorder %v251, %v282
        %vm297 = vcmp.eq.s32.totalorder %v251, %v286
        %vm298 = vcmp.eq.s32.totalorder %v251, %v290
        %vm299 = vcmp.eq.s32.totalorder %v252, %v262
        %vm300 = vcmp.eq.s32.totalorder %v252, %v266
        %vm301 = vcmp.eq.s32.totalorder %v252, %v270
        %vm302 = vcmp.eq.s32.totalorder %v252, %v274
        %vm303 = vcmp.eq.s32.totalorder %v252, %v278
        %vm304 = vcmp.eq.s32.totalorder %v252, %v282
        %vm305 = vcmp.eq.s32.totalorder %v252, %v286
        %vm306 = vcmp.eq.s32.totalorder %v252, %v290
        %vm307 = vcmp.eq.s32.totalorder %v253, %v262
        %vm308 = vcmp.eq.s32.totalorder %v253, %v266
        %vm309 = vcmp.eq.s32.totalorder %v253, %v270
        %vm310 = vcmp.eq.s32.totalorder %v253, %v274
        %vm311 = vcmp.eq.s32.totalorder %v253, %v278
        %vm312 = vcmp.eq.s32.totalorder %v253, %v282
        %vm313 = vcmp.eq.s32.totalorder %v253, %v286
        %vm314 = vcmp.eq.s32.totalorder %v253, %v290
        %vm315 = vcmp.eq.s32.totalorder %v254, %v262
        %vm316 = vcmp.eq.s32.totalorder %v254, %v266
        %vm317 = vcmp.eq.s32.totalorder %v254, %v270
        %vm318 = vcmp.eq.s32.totalorder %v254, %v274
        %vm319 = vcmp.eq.s32.totalorder %v254, %v278
        %vm320 = vcmp.eq.s32.totalorder %v254, %v282
        %vm321 = vcmp.eq.s32.totalorder %v254, %v286
        %vm322 = vcmp.eq.s32.totalorder %v254, %v290
        %vm323 = vcmp.eq.s32.totalorder %v255, %v262
        %vm324 = vcmp.eq.s32.totalorder %v255, %v266
        %vm325 = vcmp.eq.s32.totalorder %v255, %v270
        %vm326 = vcmp.eq.s32.totalorder %v255, %v274
        %vm327 = vcmp.eq.s32.totalorder %v255, %v278
        %vm328 = vcmp.eq.s32.totalorder %v255, %v282
        %vm329 = vcmp.eq.s32.totalorder %v255, %v286
        %vm330 = vcmp.eq.s32.totalorder %v255, %v290
        %vm331 = vcmp.eq.s32.totalorder %v256, %v262
        %vm332 = vcmp.eq.s32.totalorder %v256, %v266
        %vm333 = vcmp.eq.s32.totalorder %v256, %v270
        %vm334 = vcmp.eq.s32.totalorder %v256, %v274
        %vm335 = vcmp.eq.s32.totalorder %v256, %v278
        %vm336 = vcmp.eq.s32.totalorder %v256, %v282
        %vm337 = vcmp.eq.s32.totalorder %v256, %v286
        %vm338 = vcmp.eq.s32.totalorder %v256, %v290
        %vm339 = vcmp.eq.s32.totalorder %v257, %v262
        %vm340 = vcmp.eq.s32.totalorder %v257, %v266
        %vm341 = vcmp.eq.s32.totalorder %v257, %v270
        %vm342 = vcmp.eq.s32.totalorder %v257, %v274
        %vm343 = vcmp.eq.s32.totalorder %v257, %v278
        %vm344 = vcmp.eq.s32.totalorder %v257, %v282
        %vm345 = vcmp.eq.s32.totalorder %v257, %v286
        %vm346 = vcmp.eq.s32.totalorder %v257, %v290
        %vm347 = vcmp.eq.s32.totalorder %v258, %v262
        %vm348 = vcmp.eq.s32.totalorder %v258, %v266
        %vm349 = vcmp.eq.s32.totalorder %v258, %v270
        %vm350 = vcmp.eq.s32.totalorder %v258, %v274
        %vm351 = vcmp.eq.s32.totalorder %v258, %v278
        %vm352 = vcmp.eq.s32.totalorder %v258, %v282
        %vm353 = vcmp.eq.s32.totalorder %v258, %v286
        %vm354 = vcmp.eq.s32.totalorder %v258, %v290
        %v355 = vsel %vm291, 1, 0
        %v356 = vsel %vm292, 1, 0
        %v357 = vsel %vm293, 1, 0
        %v358 = vsel %vm294, 1, 0
        %v359 = vsel %vm295, 1, 0
        %v360 = vsel %vm296, 1, 0
        %v361 = vsel %vm297, 1, 0
        %v362 = vsel %vm298, 1, 0
        %v363 = vsel %vm299, 1, 0
        %v364 = vsel %vm300, 1, 0
        %v365 = vsel %vm301, 1, 0
        %v366 = vsel %vm302, 1, 0
        %v367 = vsel %vm303, 1, 0
        %v368 = vsel %vm304, 1, 0
        %v369 = vsel %vm305, 1, 0
        %v370 = vsel %vm306, 1, 0
        %v371 = vsel %vm307, 1, 0
        %v372 = vsel %vm308, 1, 0
        %v373 = vsel %vm309, 1, 0
        %v374 = vsel %vm310, 1, 0
        %v375 = vsel %vm311, 1, 0
        %v376 = vsel %vm312, 1, 0
        %v377 = vsel %vm313, 1, 0
        %v378 = vsel %vm314, 1, 0
        %v379 = vsel %vm315, 1, 0
        %v380 = vsel %vm316, 1, 0
        %v381 = vsel %vm317, 1, 0
        %v382 = vsel %vm318, 1, 0
        %v383 = vsel %vm319, 1, 0
        %v384 = vsel %vm320, 1, 0
        %v385 = vsel %vm321, 1, 0
        %v386 = vsel %vm322, 1, 0
        %v387 = vsel %vm323, 1, 0
        %v388 = vsel %vm324, 1, 0
        %v389 = vsel %vm325, 1, 0
        %v390 = vsel %vm326, 1, 0
        %v391 = vsel %vm327, 1, 0
        %v392 = vsel %vm328, 1, 0
        %v393 = vsel %vm329, 1, 0
        %v394 = vsel %vm330, 1, 0
        %v395 = vsel %vm331, 1, 0
        %v396 = vsel %vm332, 1, 0
        %v397 = vsel %vm333, 1, 0
        %v398 = vsel %vm334, 1, 0
        %v399 = vsel %vm335, 1, 0
        %v400 = vsel %vm336, 1, 0
        %v401 = vsel %vm337, 1, 0
        %v402 = vsel %vm338, 1, 0
        %v403 = vsel %vm339, 1, 0
        %v404 = vsel %vm340, 1, 0
        %v405 = vsel %vm341, 1, 0
        %v406 = vsel %vm342, 1, 0
        %v407 = vsel %vm343, 1, 0
        %v408 = vsel %vm344, 1, 0
        %v409 = vsel %vm345, 1, 0
        %v410 = vsel %vm346, 1, 0
        %v411 = vsel %vm347, 1, 0
        %v412 = vsel %vm348, 1, 0
        %v413 = vsel %vm349, 1, 0
        %v414 = vsel %vm350, 1, 0
        %v415 = vsel %vm351, 1, 0
        %v416 = vsel %vm352, 1, 0
        %v417 = vsel %vm353, 1, 0
        %v418 = vsel %vm354, 1, 0
        %v419 = vcvt.s32.f32 %v355
        %v420 = vcvt.s32.f32 %v356
        %v421 = vcvt.s32.f32 %v357
        %v422 = vcvt.s32.f32 %v358
        %v423 = vcvt.s32.f32 %v359
        %v424 = vcvt.s32.f32 %v360
        %v425 = vcvt.s32.f32 %v361
        %v426 = vcvt.s32.f32 %v362
        %v427 = vcvt.s32.f32 %v363
        %v428 = vcvt.s32.f32 %v364
        %v429 = vcvt.s32.f32 %v365
        %v430 = vcvt.s32.f32 %v366
        %v431 = vcvt.s32.f32 %v367
        %v432 = vcvt.s32.f32 %v368
        %v433 = vcvt.s32.f32 %v369
        %v434 = vcvt.s32.f32 %v370
        %v435 = vcvt.s32.f32 %v371
        %v436 = vcvt.s32.f32 %v372
        %v437 = vcvt.s32.f32 %v373
        %v438 = vcvt.s32.f32 %v374
        %v439 = vcvt.s32.f32 %v375
        %v440 = vcvt.s32.f32 %v376
        %v441 = vcvt.s32.f32 %v377
        %v442 = vcvt.s32.f32 %v378
        %v443 = vcvt.s32.f32 %v379
        %v444 = vcvt.s32.f32 %v380
        %v445 = vcvt.s32.f32 %v381
        %v446 = vcvt.s32.f32 %v382
        %v447 = vcvt.s32.f32 %v383
        %v448 = vcvt.s32.f32 %v384
        %v449 = vcvt.s32.f32 %v385
        %v450 = vcvt.s32.f32 %v386
        %v451 = vcvt.s32.f32 %v387
        %v452 = vcvt.s32.f32 %v388
        %v453 = vcvt.s32.f32 %v389
        %v454 = vcvt.s32.f32 %v390
        %v455 = vcvt.s32.f32 %v391
        %v456 = vcvt.s32.f32 %v392
        %v457 = vcvt.s32.f32 %v393
        %v458 = vcvt.s32.f32 %v394
        %v459 = vcvt.s32.f32 %v395
        %v460 = vcvt.s32.f32 %v396
        %v461 = vcvt.s32.f32 %v397
        %v462 = vcvt.s32.f32 %v398
        %v463 = vcvt.s32.f32 %v399
        %v464 = vcvt.s32.f32 %v400
        %v465 = vcvt.s32.f32 %v401
        %v466 = vcvt.s32.f32 %v402
        %v467 = vcvt.s32.f32 %v403
        %v468 = vcvt.s32.f32 %v404
        %v469 = vcvt.s32.f32 %v405
        %v470 = vcvt.s32.f32 %v406
        %v471 = vcvt.s32.f32 %v407
        %v472 = vcvt.s32.f32 %v408
        %v473 = vcvt.s32.f32 %v409
        %v474 = vcvt.s32.f32 %v410
        %v475 = vcvt.s32.f32 %v411
        %v476 = vcvt.s32.f32 %v412
        %v477 = vcvt.s32.f32 %v413
        %v478 = vcvt.s32.f32 %v414
        %v479 = vcvt.s32.f32 %v415
        %v480 = vcvt.s32.f32 %v416
        %v481 = vcvt.s32.f32 %v417
        %v482 = vcvt.s32.f32 %v418
        %v483 = vld [vmem:[#allocation5] sm:$0xff]
        %v484 = vld [vmem:[#allocation5 + $0x8] sm:$0xff]
        %v485 = vld [vmem:[#allocation5 + $0x10] sm:$0xff]
        %v486 = vld [vmem:[#allocation5 + $0x18] sm:$0xff]
        %vm487 = vcmask 523264
        %v489 = vsel %vm487, %v483, 0
        %v492 = vsel %vm487, %v484, 0
        %v495 = vsel %vm487, %v485, 0
        %v498 = vsel %vm487, %v486, 0
        %500 = vmatprep.subr.mxu0 %v420
        %501 = vmatpush1.msra.mxu0 %v419
        %502 = vmatprep.subr.mxu0 %v428
        %503 = vmatpush1.msra.mxu0 %v427
        %504 = vmatprep.subr.mxu0 %v436
        %505 = vmatpush1.msra.mxu0 %v435
        %506 = vmatprep.subr.mxu0 %v444
        %507 = vmatpush1.msra.mxu0 %v443
        %508 = vmatprep.subr.mxu0 %v452
        %509 = vmatpush1.msra.mxu0 %v451
        %510 = vmatprep.subr.mxu0 %v460
        %511 = vmatpush1.msra.mxu0 %v459
        %512 = vmatprep.subr.mxu0 %v468
        %513 = vmatpush1.msra.mxu0 %v467
        %514 = vmatprep.subr.mxu0 %v476
        %515 = vmatpush1.msra.mxu0 %v475
        %516 = vmatprep.subr.mxu0 0.0
        %517 = vmatpush1.msra.mxu0 0.0
        %518 = vmatprep.subr.mxu0 0.0
        %519 = vmatpush1.msra.mxu0 0.0
        %520 = vmatprep.subr.mxu0 0.0
        %521 = vmatpush1.msra.mxu0 0.0
        %522 = vmatprep.subr.mxu0 0.0
        %523 = vmatpush1.msra.mxu0 0.0
        %524 = vmatprep.subr.mxu0 0.0
        %525 = vmatpush1.msra.mxu0 0.0
        %526 = vmatprep.subr.mxu0 0.0
        %527 = vmatpush1.msra.mxu0 0.0
        %528 = vmatprep.subr.mxu0 0.0
        %529 = vmatpush1.msra.mxu0 0.0
        %530 = vmatprep.subr.mxu0 0.0
        %531 = vmatpush1.msra.mxu0 0.0
        %532 = vmatprep.subr.mxu0 0.0
        %533 = vmatpush1.msra.mxu0 0.0
        %534 = vmatprep.subr.mxu0 0.0
        %535 = vmatpush1.msra.mxu0 0.0
        %536 = vmatprep.subr.mxu0 0.0
        %537 = vmatpush1.msra.mxu0 0.0
        %538 = vmatprep.subr.mxu0 0.0
        %539 = vmatpush1.msra.mxu0 0.0
        %540 = vmatprep.subr.mxu0 0.0
        %541 = vmatpush1.msra.mxu0 0.0
        %542 = vmatprep.subr.mxu0 0.0
        %543 = vmatpush1.msra.mxu0 0.0
        %544 = vmatprep.subr.mxu0 0.0
        %545 = vmatpush1.msra.mxu0 0.0
        %546 = vmatprep.subr.mxu0 0.0
        %547 = vmatpush1.msra.mxu0 0.0
        %548 = vmatprep.subr.mxu0 0.0
        %549 = vmatpush1.msra.mxu0 0.0
        %550 = vmatprep.subr.mxu0 0.0
        %551 = vmatpush1.msra.mxu0 0.0
        %552 = vmatprep.subr.mxu0 0.0
        %553 = vmatpush1.msra.mxu0 0.0
        %554 = vmatprep.subr.mxu0 0.0
        %555 = vmatpush1.msra.mxu0 0.0
        %556 = vmatprep.subr.mxu0 0.0
        %557 = vmatpush1.msra.mxu0 0.0
        %558 = vmatprep.subr.mxu0 0.0
        %559 = vmatpush1.msra.mxu0 0.0
        %560 = vmatprep.subr.mxu0 0.0
        %561 = vmatpush1.msra.mxu0 0.0
        %562 = vmatprep.subr.mxu0 0.0
        %563 = vmatpush1.msra.mxu0 0.0
        %564 = vmatprep.mubr.f32.mxu0 0.0
        %565 = vmatmul.mubr.f32.gmra.mrb[0].mxu0 %v489
        %v566 = vpop.f32.mrb[0].mxu0
        %v567 = vadd.f32 0.0, %v566
        %v568 = vpop.f32.mrb[0].mxu0
        %v569 = vadd.f32 0.0, %v568
        %570 = vmatprep.mubr.f32.mxu0 0.0
        %571 = vmatmul.mubr.f32.gmra.mrb[0].mxu0 %v492
        %v572 = vpop.f32.mrb[0].mxu0
        %v573 = vadd.f32 0.0, %v572
        %v574 = vpop.f32.mrb[0].mxu0
        %v575 = vadd.f32 0.0, %v574
        %576 = vmatprep.mubr.f32.mxu0 0.0
        %577 = vmatmul.mubr.f32.gmra.mrb[0].mxu0 %v495
        %v578 = vpop.f32.mrb[0].mxu0
        %v579 = vadd.f32 0.0, %v578
        %v580 = vpop.f32.mrb[0].mxu0
        %v581 = vadd.f32 0.0, %v580
        %582 = vmatprep.mubr.f32.mxu0 0.0
        %583 = vmatmul.mubr.f32.gmra.mrb[0].mxu0 %v498
        %v584 = vpop.f32.mrb[0].mxu0
        %v585 = vadd.f32 0.0, %v584
        %v586 = vpop.f32.mrb[0].mxu0
        %v587 = vadd.f32 0.0, %v586
        %588 = vdwg.mxu0
        %589 = vmatprep.subr.mxu0 %v422
        %590 = vmatpush1.msra.mxu0 %v421
        %591 = vmatprep.subr.mxu0 %v430
        %592 = vmatpush1.msra.mxu0 %v429
        %593 = vmatprep.subr.mxu0 %v438
        %594 = vmatpush1.msra.mxu0 %v437
        %595 = vmatprep.subr.mxu0 %v446
        %596 = vmatpush1.msra.mxu0 %v445
        %597 = vmatprep.subr.mxu0 %v454
        %598 = vmatpush1.msra.mxu0 %v453
        %599 = vmatprep.subr.mxu0 %v462
        %600 = vmatpush1.msra.mxu0 %v461
        %601 = vmatprep.subr.mxu0 %v470
        %602 = vmatpush1.msra.mxu0 %v469
        %603 = vmatprep.subr.mxu0 %v478
        %604 = vmatpush1.msra.mxu0 %v477
        %605 = vmatprep.subr.mxu0 0.0
        %606 = vmatpush1.msra.mxu0 0.0
        %607 = vmatprep.subr.mxu0 0.0
        %608 = vmatpush1.msra.mxu0 0.0
        %609 = vmatprep.subr.mxu0 0.0
        %610 = vmatpush1.msra.mxu0 0.0
        %611 = vmatprep.subr.mxu0 0.0
        %612 = vmatpush1.msra.mxu0 0.0
        %613 = vmatprep.subr.mxu0 0.0
        %614 = vmatpush1.msra.mxu0 0.0
        %615 = vmatprep.subr.mxu0 0.0
        %616 = vmatpush1.msra.mxu0 0.0
        %617 = vmatprep.subr.mxu0 0.0
        %618 = vmatpush1.msra.mxu0 0.0
        %619 = vmatprep.subr.mxu0 0.0
        %620 = vmatpush1.msra.mxu0 0.0
        %621 = vmatprep.subr.mxu0 0.0
        %622 = vmatpush1.msra.mxu0 0.0
        %623 = vmatprep.subr.mxu0 0.0
        %624 = vmatpush1.msra.mxu0 0.0
        %625 = vmatprep.subr.mxu0 0.0
        %626 = vmatpush1.msra.mxu0 0.0
        %627 = vmatprep.subr.mxu0 0.0
        %628 = vmatpush1.msra.mxu0 0.0
        %629 = vmatprep.subr.mxu0 0.0
        %630 = vmatpush1.msra.mxu0 0.0
        %631 = vmatprep.subr.mxu0 0.0
        %632 = vmatpush1.msra.mxu0 0.0
        %633 = vmatprep.subr.mxu0 0.0
        %634 = vmatpush1.msra.mxu0 0.0
        %635 = vmatprep.subr.mxu0 0.0
        %636 = vmatpush1.msra.mxu0 0.0
        %637 = vmatprep.subr.mxu0 0.0
        %638 = vmatpush1.msra.mxu0 0.0
        %639 = vmatprep.subr.mxu0 0.0
        %640 = vmatpush1.msra.mxu0 0.0
        %641 = vmatprep.subr.mxu0 0.0
        %642 = vmatpush1.msra.mxu0 0.0
        %643 = vmatprep.subr.mxu0 0.0
        %644 = vmatpush1.msra.mxu0 0.0
        %645 = vmatprep.subr.mxu0 0.0
        %646 = vmatpush1.msra.mxu0 0.0
        %647 = vmatprep.subr.mxu0 0.0
        %648 = vmatpush1.msra.mxu0 0.0
        %649 = vmatprep.subr.mxu0 0.0
        %650 = vmatpush1.msra.mxu0 0.0
        %651 = vmatprep.subr.mxu0 0.0
        %652 = vmatpush1.msra.mxu0 0.0
        %653 = vmatprep.mubr.f32.mxu0 0.0
        %654 = vmatmul.mubr.f32.gmra.mrb[0].mxu0 %v489
        %v655 = vpop.f32.mrb[0].mxu0
        %v656 = vadd.f32 0.0, %v655
        %v657 = vpop.f32.mrb[0].mxu0
        %v658 = vadd.f32 0.0, %v657
        %659 = vmatprep.mubr.f32.mxu0 0.0
        %660 = vmatmul.mubr.f32.gmra.mrb[0].mxu0 %v492
        %v661 = vpop.f32.mrb[0].mxu0
        %v662 = vadd.f32 0.0, %v661
        %v663 = vpop.f32.mrb[0].mxu0
        %v664 = vadd.f32 0.0, %v663
        %665 = vmatprep.mubr.f32.mxu0 0.0
        %666 = vmatmul.mubr.f32.gmra.mrb[0].mxu0 %v495
        %v667 = vpop.f32.mrb[0].mxu0
        %v668 = vadd.f32 0.0, %v667
        %v669 = vpop.f32.mrb[0].mxu0
        %v670 = vadd.f32 0.0, %v669
        %671 = vmatprep.mubr.f32.mxu0 0.0
        %672 = vmatmul.mubr.f32.gmra.mrb[0].mxu0 %v498
        %v673 = vpop.f32.mrb[0].mxu0
        %v674 = vadd.f32 0.0, %v673
        %v675 = vpop.f32.mrb[0].mxu0
        %v676 = vadd.f32 0.0, %v675
        %677 = vdwg.mxu0
        %678 = vmatprep.subr.mxu0 %v424
        %679 = vmatpush1.msra.mxu0 %v423
        %680 = vmatprep.subr.mxu0 %v432
        %681 = vmatpush1.msra.mxu0 %v431
        %682 = vmatprep.subr.mxu0 %v440
        %683 = vmatpush1.msra.mxu0 %v439
        %684 = vmatprep.subr.mxu0 %v448
        %685 = vmatpush1.msra.mxu0 %v447
        %686 = vmatprep.subr.mxu0 %v456
        %687 = vmatpush1.msra.mxu0 %v455
        %688 = vmatprep.subr.mxu0 %v464
        %689 = vmatpush1.msra.mxu0 %v463
        %690 = vmatprep.subr.mxu0 %v472
        %691 = vmatpush1.msra.mxu0 %v471
        %692 = vmatprep.subr.mxu0 %v480
        %693 = vmatpush1.msra.mxu0 %v479
        %694 = vmatprep.subr.mxu0 0.0
        %695 = vmatpush1.msra.mxu0 0.0
        %696 = vmatprep.subr.mxu0 0.0
        %697 = vmatpush1.msra.mxu0 0.0
        %698 = vmatprep.subr.mxu0 0.0
        %699 = vmatpush1.msra.mxu0 0.0
        %700 = vmatprep.subr.mxu0 0.0
        %701 = vmatpush1.msra.mxu0 0.0
        %702 = vmatprep.subr.mxu0 0.0
        %703 = vmatpush1.msra.mxu0 0.0
        %704 = vmatprep.subr.mxu0 0.0
        %705 = vmatpush1.msra.mxu0 0.0
        %706 = vmatprep.subr.mxu0 0.0
        %707 = vmatpush1.msra.mxu0 0.0
        %708 = vmatprep.subr.mxu0 0.0
        %709 = vmatpush1.msra.mxu0 0.0
        %710 = vmatprep.subr.mxu0 0.0
        %711 = vmatpush1.msra.mxu0 0.0
        %712 = vmatprep.subr.mxu0 0.0
        %713 = vmatpush1.msra.mxu0 0.0
        %714 = vmatprep.subr.mxu0 0.0
        %715 = vmatpush1.msra.mxu0 0.0
        %716 = vmatprep.subr.mxu0 0.0
        %717 = vmatpush1.msra.mxu0 0.0
        %718 = vmatprep.subr.mxu0 0.0
        %719 = vmatpush1.msra.mxu0 0.0
        %720 = vmatprep.subr.mxu0 0.0
        %721 = vmatpush1.msra.mxu0 0.0
        %722 = vmatprep.subr.mxu0 0.0
        %723 = vmatpush1.msra.mxu0 0.0
        %724 = vmatprep.subr.mxu0 0.0
        %725 = vmatpush1.msra.mxu0 0.0
        %726 = vmatprep.subr.mxu0 0.0
        %727 = vmatpush1.msra.mxu0 0.0
        %728 = vmatprep.subr.mxu0 0.0
        %729 = vmatpush1.msra.mxu0 0.0
        %730 = vmatprep.subr.mxu0 0.0
        %731 = vmatpush1.msra.mxu0 0.0
        %732 = vmatprep.subr.mxu0 0.0
        %733 = vmatpush1.msra.mxu0 0.0
        %734 = vmatprep.subr.mxu0 0.0
        %735 = vmatpush1.msra.mxu0 0.0
        %736 = vmatprep.subr.mxu0 0.0
        %737 = vmatpush1.msra.mxu0 0.0
        %738 = vmatprep.subr.mxu0 0.0
        %739 = vmatpush1.msra.mxu0 0.0
        %740 = vmatprep.subr.mxu0 0.0
        %741 = vmatpush1.msra.mxu0 0.0
        %742 = vmatprep.mubr.f32.mxu0 0.0
        %743 = vmatmul.mubr.f32.gmra.mrb[0].mxu0 %v489
        %v744 = vpop.f32.mrb[0].mxu0
        %v745 = vadd.f32 0.0, %v744
        %v746 = vpop.f32.mrb[0].mxu0
        %v747 = vadd.f32 0.0, %v746
        %748 = vmatprep.mubr.f32.mxu0 0.0
        %749 = vmatmul.mubr.f32.gmra.mrb[0].mxu0 %v492
        %v750 = vpop.f32.mrb[0].mxu0
        %v751 = vadd.f32 0.0, %v750
        %v752 = vpop.f32.mrb[0].mxu0
        %v753 = vadd.f32 0.0, %v752
        %754 = vmatprep.mubr.f32.mxu0 0.0
        %755 = vmatmul.mubr.f32.gmra.mrb[0].mxu0 %v495
        %v756 = vpop.f32.mrb[0].mxu0
        %v757 = vadd.f32 0.0, %v756
        %v758 = vpop.f32.mrb[0].mxu0
        %v759 = vadd.f32 0.0, %v758
        %760 = vmatprep.mubr.f32.mxu0 0.0
        %761 = vmatmul.mubr.f32.gmra.mrb[0].mxu0 %v498
        %v762 = vpop.f32.mrb[0].mxu0
        %v763 = vadd.f32 0.0, %v762
        %v764 = vpop.f32.mrb[0].mxu0
        %v765 = vadd.f32 0.0, %v764
        %766 = vdwg.mxu0
        %767 = vmatprep.subr.mxu0 %v426
        %768 = vmatpush1.msra.mxu0 %v425
        %769 = vmatprep.subr.mxu0 %v434
        %770 = vmatpush1.msra.mxu0 %v433
        %771 = vmatprep.subr.mxu0 %v442
        %772 = vmatpush1.msra.mxu0 %v441
        %773 = vmatprep.subr.mxu0 %v450
        %774 = vmatpush1.msra.mxu0 %v449
        %775 = vmatprep.subr.mxu0 %v458
        %776 = vmatpush1.msra.mxu0 %v457
        %777 = vmatprep.subr.mxu0 %v466
        %778 = vmatpush1.msra.mxu0 %v465
        %779 = vmatprep.subr.mxu0 %v474
        %780 = vmatpush1.msra.mxu0 %v473
        %781 = vmatprep.subr.mxu0 %v482
        %782 = vmatpush1.msra.mxu0 %v481
        %783 = vmatprep.subr.mxu0 0.0
        %784 = vmatpush1.msra.mxu0 0.0
        %785 = vmatprep.subr.mxu0 0.0
        %786 = vmatpush1.msra.mxu0 0.0
        %787 = vmatprep.subr.mxu0 0.0
        %788 = vmatpush1.msra.mxu0 0.0
        %789 = vmatprep.subr.mxu0 0.0
        %790 = vmatpush1.msra.mxu0 0.0
        %791 = vmatprep.subr.mxu0 0.0
        %792 = vmatpush1.msra.mxu0 0.0
        %793 = vmatprep.subr.mxu0 0.0
        %794 = vmatpush1.msra.mxu0 0.0
        %795 = vmatprep.subr.mxu0 0.0
        %796 = vmatpush1.msra.mxu0 0.0
        %797 = vmatprep.subr.mxu0 0.0
        %798 = vmatpush1.msra.mxu0 0.0
        %799 = vmatprep.subr.mxu0 0.0
        %800 = vmatpush1.msra.mxu0 0.0
        %801 = vmatprep.subr.mxu0 0.0
        %802 = vmatpush1.msra.mxu0 0.0
        %803 = vmatprep.subr.mxu0 0.0
        %804 = vmatpush1.msra.mxu0 0.0
        %805 = vmatprep.subr.mxu0 0.0
        %806 = vmatpush1.msra.mxu0 0.0
        %807 = vmatprep.subr.mxu0 0.0
        %808 = vmatpush1.msra.mxu0 0.0
        %809 = vmatprep.subr.mxu0 0.0
        %810 = vmatpush1.msra.mxu0 0.0
        %811 = vmatprep.subr.mxu0 0.0
        %812 = vmatpush1.msra.mxu0 0.0
        %813 = vmatprep.subr.mxu0 0.0
        %814 = vmatpush1.msra.mxu0 0.0
        %815 = vmatprep.subr.mxu0 0.0
        %816 = vmatpush1.msra.mxu0 0.0
        %817 = vmatprep.subr.mxu0 0.0
        %818 = vmatpush1.msra.mxu0 0.0
        %819 = vmatprep.subr.mxu0 0.0
        %820 = vmatpush1.msra.mxu0 0.0
        %821 = vmatprep.subr.mxu0 0.0
        %822 = vmatpush1.msra.mxu0 0.0
        %823 = vmatprep.subr.mxu0 0.0
        %824 = vmatpush1.msra.mxu0 0.0
        %825 = vmatprep.subr.mxu0 0.0
        %826 = vmatpush1.msra.mxu0 0.0
        %827 = vmatprep.subr.mxu0 0.0
        %828 = vmatpush1.msra.mxu0 0.0
        %829 = vmatprep.subr.mxu0 0.0
        %830 = vmatpush1.msra.mxu0 0.0
        %831 = vmatprep.mubr.f32.mxu0 0.0
        %832 = vmatmul.mubr.f32.gmra.mrb[0].mxu0 %v489
        %v833 = vpop.f32.mrb[0].mxu0
        %v834 = vadd.f32 0.0, %v833
        %v835 = vpop.f32.mrb[0].mxu0
        %v836 = vadd.f32 0.0, %v835
        %837 = vmatprep.mubr.f32.mxu0 0.0
        %838 = vmatmul.mubr.f32.gmra.mrb[0].mxu0 %v492
        %v839 = vpop.f32.mrb[0].mxu0
        %v840 = vadd.f32 0.0, %v839
        %v841 = vpop.f32.mrb[0].mxu0
        %v842 = vadd.f32 0.0, %v841
        %843 = vmatprep.mubr.f32.mxu0 0.0
        %844 = vmatmul.mubr.f32.gmra.mrb[0].mxu0 %v495
        %v845 = vpop.f32.mrb[0].mxu0
        %v846 = vadd.f32 0.0, %v845
        %v847 = vpop.f32.mrb[0].mxu0
        %v848 = vadd.f32 0.0, %v847
        %849 = vmatprep.mubr.f32.mxu0 0.0
        %850 = vmatmul.mubr.f32.gmra.mrb[0].mxu0 %v498
        %v851 = vpop.f32.mrb[0].mxu0
        %v852 = vadd.f32 0.0, %v851
        %v853 = vpop.f32.mrb[0].mxu0
        %v854 = vadd.f32 0.0, %v853
        %855 = vdwg.mxu0
        %v856 = vmul.f32 %v567, %v745
        %v857 = vmul.f32 %v569, %v747
        %v858 = vmul.f32 %v656, %v834
        %v859 = vmul.f32 %v658, %v836
        %v860 = vmul.f32 %v573, %v751
        %v861 = vmul.f32 %v575, %v753
        %v862 = vmul.f32 %v662, %v840
        %v863 = vmul.f32 %v664, %v842
        %v864 = vmul.f32 %v579, %v757
        %v865 = vmul.f32 %v581, %v759
        %v866 = vmul.f32 %v668, %v846
        %v867 = vmul.f32 %v670, %v848
        %v868 = vmul.f32 %v585, %v763
        %v869 = vmul.f32 %v587, %v765
        %v870 = vmul.f32 %v674, %v852
        %v871 = vmul.f32 %v676, %v854
        %v872 = vld [vmem:[#allocation7] sm:$0xff]
        %vm873 = vcmask 261120
        %v875 = vsel %vm873, %v872, 0
        %877 = vmatprep.subr.mxu0 %v857
        %878 = vmatpush1.msra.mxu0 %v856
        %879 = vmatprep.subr.mxu0 %v861
        %880 = vmatpush1.msra.mxu0 %v860
        %881 = vmatprep.subr.mxu0 %v865
        %882 = vmatpush1.msra.mxu0 %v864
        %883 = vmatprep.subr.mxu0 %v869
        %884 = vmatpush1.msra.mxu0 %v868
        %885 = vmatprep.subr.mxu0 0.0
        %886 = vmatpush1.msra.mxu0 0.0
        %887 = vmatprep.subr.mxu0 0.0
        %888 = vmatpush1.msra.mxu0 0.0
        %889 = vmatprep.subr.mxu0 0.0
        %890 = vmatpush1.msra.mxu0 0.0
        %891 = vmatprep.subr.mxu0 0.0
        %892 = vmatpush1.msra.mxu0 0.0
        %893 = vmatprep.subr.mxu0 0.0
        %894 = vmatpush1.msra.mxu0 0.0
        %895 = vmatprep.subr.mxu0 0.0
        %896 = vmatpush1.msra.mxu0 0.0
        %897 = vmatprep.subr.mxu0 0.0
        %898 = vmatpush1.msra.mxu0 0.0
        %899 = vmatprep.subr.mxu0 0.0
        %900 = vmatpush1.msra.mxu0 0.0
        %901 = vmatprep.subr.mxu0 0.0
        %902 = vmatpush1.msra.mxu0 0.0
        %903 = vmatprep.subr.mxu0 0.0
        %904 = vmatpush1.msra.mxu0 0.0
        %905 = vmatprep.subr.mxu0 0.0
        %906 = vmatpush1.msra.mxu0 0.0
        %907 = vmatprep.subr.mxu0 0.0
        %908 = vmatpush1.msra.mxu0 0.0
        %909 = vmatprep.subr.mxu0 0.0
        %910 = vmatpush1.msra.mxu0 0.0
        %911 = vmatprep.subr.mxu0 0.0
        %912 = vmatpush1.msra.mxu0 0.0
        %913 = vmatprep.subr.mxu0 0.0
        %914 = vmatpush1.msra.mxu0 0.0
        %915 = vmatprep.subr.mxu0 0.0
        %916 = vmatpush1.msra.mxu0 0.0
        %917 = vmatprep.subr.mxu0 0.0
        %918 = vmatpush1.msra.mxu0 0.0
        %919 = vmatprep.subr.mxu0 0.0
        %920 = vmatpush1.msra.mxu0 0.0
        %921 = vmatprep.subr.mxu0 0.0
        %922 = vmatpush1.msra.mxu0 0.0
        %923 = vmatprep.subr.mxu0 0.0
        %924 = vmatpush1.msra.mxu0 0.0
        %925 = vmatprep.subr.mxu0 0.0
        %926 = vmatpush1.msra.mxu0 0.0
        %927 = vmatprep.subr.mxu0 0.0
        %928 = vmatpush1.msra.mxu0 0.0
        %929 = vmatprep.subr.mxu0 0.0
        %930 = vmatpush1.msra.mxu0 0.0
        %931 = vmatprep.subr.mxu0 0.0
        %932 = vmatpush1.msra.mxu0 0.0
        %933 = vmatprep.subr.mxu0 0.0
        %934 = vmatpush1.msra.mxu0 0.0
        %935 = vmatprep.subr.mxu0 0.0
        %936 = vmatpush1.msra.mxu0 0.0
        %937 = vmatprep.subr.mxu0 0.0
        %938 = vmatpush1.msra.mxu0 0.0
        %939 = vmatprep.subr.mxu0 0.0
        %940 = vmatpush1.msra.mxu0 0.0
        %941 = vmatprep.mubr.f32.mxu0 0.0
        %942 = vmatmul.mubr.f32.gmra.mrb[0].mxu0 %v875
        %v943 = vpop.f32.mrb[0].mxu0
        %v944 = vadd.f32 0.0, %v943
        %v945 = vpop.f32.mrb[0].mxu0
        %v946 = vadd.f32 0.0, %v945
        %947 = vdwg.mxu0
        %948 = vmatprep.subr.mxu0 %v859
        %949 = vmatpush1.msra.mxu0 %v858
        %950 = vmatprep.subr.mxu0 %v863
        %951 = vmatpush1.msra.mxu0 %v862
        %952 = vmatprep.subr.mxu0 %v867
        %953 = vmatpush1.msra.mxu0 %v866
        %954 = vmatprep.subr.mxu0 %v871
        %955 = vmatpush1.msra.mxu0 %v870
        %956 = vmatprep.subr.mxu0 0.0
        %957 = vmatpush1.msra.mxu0 0.0
        %958 = vmatprep.subr.mxu0 0.0
        %959 = vmatpush1.msra.mxu0 0.0
        %960 = vmatprep.subr.mxu0 0.0
        %961 = vmatpush1.msra.mxu0 0.0
        %962 = vmatprep.subr.mxu0 0.0
        %963 = vmatpush1.msra.mxu0 0.0
        %964 = vmatprep.subr.mxu0 0.0
        %965 = vmatpush1.msra.mxu0 0.0
        %966 = vmatprep.subr.mxu0 0.0
        %967 = vmatpush1.msra.mxu0 0.0
        %968 = vmatprep.subr.mxu0 0.0
        %969 = vmatpush1.msra.mxu0 0.0
        %970 = vmatprep.subr.mxu0 0.0
        %971 = vmatpush1.msra.mxu0 0.0
        %972 = vmatprep.subr.mxu0 0.0
        %973 = vmatpush1.msra.mxu0 0.0
        %974 = vmatprep.subr.mxu0 0.0
        %975 = vmatpush1.msra.mxu0 0.0
        %976 = vmatprep.subr.mxu0 0.0
        %977 = vmatpush1.msra.mxu0 0.0
        %978 = vmatprep.subr.mxu0 0.0
        %979 = vmatpush1.msra.mxu0 0.0
        %980 = vmatprep.subr.mxu0 0.0
        %981 = vmatpush1.msra.mxu0 0.0
        %982 = vmatprep.subr.mxu0 0.0
        %983 = vmatpush1.msra.mxu0 0.0
        %984 = vmatprep.subr.mxu0 0.0
        %985 = vmatpush1.msra.mxu0 0.0
        %986 = vmatprep.subr.mxu0 0.0
        %987 = vmatpush1.msra.mxu0 0.0
        %988 = vmatprep.subr.mxu0 0.0
        %989 = vmatpush1.msra.mxu0 0.0
        %990 = vmatprep.subr.mxu0 0.0
        %991 = vmatpush1.msra.mxu0 0.0
        %992 = vmatprep.subr.mxu0 0.0
        %993 = vmatpush1.msra.mxu0 0.0
        %994 = vmatprep.subr.mxu0 0.0
        %995 = vmatpush1.msra.mxu0 0.0
        %996 = vmatprep.subr.mxu0 0.0
        %997 = vmatpush1.msra.mxu0 0.0
        %998 = vmatprep.subr.mxu0 0.0
        %999 = vmatpush1.msra.mxu0 0.0
        %1000 = vmatprep.subr.mxu0 0.0
        %1001 = vmatpush1.msra.mxu0 0.0
        %1002 = vmatprep.subr.mxu0 0.0
        %1003 = vmatpush1.msra.mxu0 0.0
        %1004 = vmatprep.subr.mxu0 0.0
        %1005 = vmatpush1.msra.mxu0 0.0
        %1006 = vmatprep.subr.mxu0 0.0
        %1007 = vmatpush1.msra.mxu0 0.0
        %1008 = vmatprep.subr.mxu0 0.0
        %1009 = vmatpush1.msra.mxu0 0.0
        %1010 = vmatprep.subr.mxu0 0.0
        %1011 = vmatpush1.msra.mxu0 0.0
        %1012 = vmatprep.mubr.f32.mxu0 0.0
        %1013 = vmatmul.mubr.f32.gmra.mrb[0].mxu0 %v875
        %v1014 = vpop.f32.mrb[0].mxu0
        %v1015 = vadd.f32 0.0, %v1014
        %v1016 = vpop.f32.mrb[0].mxu0
        %v1017 = vadd.f32 0.0, %v1016
        %1018 = vdwg.mxu0
        %v1019 = vlaneseq
        %v1020 = vshrl.u32 %v1019, 7
        %v1021 = vsub.s32 2, %v1020
        %v1022 = vrot.slane %v216, %v1021
        %v1023 = vlaneseq
        %v1024 = vshrl.u32 %v1023, 7
        %v1025 = vsub.s32 6, %v1024
        %v1026 = vrot.slane %v216, %v1025
        %v1027 = vlaneseq
        %v1028 = vshrl.u32 %v1027, 7
        %v1029 = vsub.s32 2, %v1028
        %v1030 = vrot.slane %v217, %v1029
        %v1031 = vlaneseq
        %v1032 = vshrl.u32 %v1031, 7
        %v1033 = vsub.s32 6, %v1032
        %v1034 = vrot.slane %v217, %v1033
        %v1035 = vlaneseq
        %v1036 = vshrl.u32 %v1035, 7
        %v1037 = vsub.s32 2, %v1036
        %v1038 = vrot.slane %v1022, %v1037
        %v1039 = vlaneseq
        %v1040 = vshrl.u32 %v1039, 7
        %v1041 = vsub.s32 2, %v1040
        %v1042 = vrot.slane %v1026, %v1041
        %v1043 = vlaneseq
        %v1044 = vshrl.u32 %v1043, 7
        %v1045 = vsub.s32 2, %v1044
        %v1046 = vrot.slane %v1030, %v1045
        %v1047 = vlaneseq
        %v1048 = vshrl.u32 %v1047, 7
        %v1049 = vsub.s32 2, %v1048
        %v1050 = vrot.slane %v1034, %v1049
        %vm1051 = vcmp.eq.s32.totalorder %v251, %v1038
        %vm1052 = vcmp.eq.s32.totalorder %v251, %v1042
        %vm1053 = vcmp.eq.s32.totalorder %v251, %v1046
        %vm1054 = vcmp.eq.s32.totalorder %v251, %v1050
        %v1055 = vsel %vm1051, %v944, 0.0
        %v1056 = vsel %vm1052, %v946, 0.0
        %v1057 = vsel %vm1053, %v1015, 0.0
        %v1058 = vsel %vm1054, %v1017, 0.0
        %v1059 = vrot.slane %v1055, 4
        %v1060 = vadd.f32 %v1055, %v1059
        %v1061 = vrot.slane %v1060, 2
        %v1062 = vadd.f32 %v1060, %v1061
        %v1063 = vrot.slane %v1062, 1
        %v1064 = vadd.f32 %v1062, %v1063
        %v1065 = vrot.slane %v1056, 4
        %v1066 = vadd.f32 %v1056, %v1065
        %v1067 = vrot.slane %v1066, 2
        %v1068 = vadd.f32 %v1066, %v1067
        %v1069 = vrot.slane %v1068, 1
        %v1070 = vadd.f32 %v1068, %v1069
        %v1071 = vrot.slane %v1057, 4
        %v1072 = vadd.f32 %v1057, %v1071
        %v1073 = vrot.slane %v1072, 2
        %v1074 = vadd.f32 %v1072, %v1073
        %v1075 = vrot.slane %v1074, 1
        %v1076 = vadd.f32 %v1074, %v1075
        %v1077 = vrot.slane %v1058, 4
        %v1078 = vadd.f32 %v1058, %v1077
        %v1079 = vrot.slane %v1078, 2
        %v1080 = vadd.f32 %v1078, %v1079
        %v1081 = vrot.slane %v1080, 1
        %v1082 = vadd.f32 %v1080, %v1081
        %v1087 = vcombine.low %v1064, %v1070
        %v1088 = vcombine.low %v1076, %v1082
        %v1090 = vunpack.c.l.s4 1966171168
        %v1091 = vunpack.c.0.s8 %v1090
        %v1092 = vlaneseq
        %v1093 = vshrl.u32 %v1092, 7
        %v1094 = vsub.s32 %v1091, %v1093
        %v1095 = vrot.slane %v1087, %v1094
        %v1097 = vunpack.c.l.s4 1966171168
        %v1098 = vunpack.c.0.s8 %v1097
        %v1099 = vlaneseq
        %v1100 = vshrl.u32 %v1099, 7
        %v1101 = vsub.s32 %v1098, %v1100
        %v1102 = vrot.slane %v1088, %v1101
        %v1103 = vcombine.low %v1095, %v1102
        %v1105 = vunpack.c.l.s4 1966171168
        %v1106 = vunpack.c.0.s8 %v1105
        %v1107 = vlaneseq
        %v1108 = vshrl.u32 %v1107, 7
        %v1109 = vsub.s32 %v1106, %v1108
        %v1110 = vrot.slane %v1103, %v1109
        %v1112 = vlaneseq
        %vm1113 = vcmp.ge.s32.totalorder %v1112, 0
        %vm1114 = vcmp.lt.s32.totalorder %v1112, 512
        %vm1115 = vmand %vm1113, %vm1114
        %1116 = vst.msk [vmem:[%s213] sm:$0xf] %vm1115, %v1110
        %s1117 = sand.u32 %s97, 1
        %s1118 = scalar_lea.sflag [#allocation4], %s1117
        %s1119 = sand.u32 %s97, 1
        %s1120 = smul.addr %s1119, 4
        %s1121 = scalar_lea.vmem [#allocation8], %s1120
        // Predicated region
        $region45: #{tpu_custom_call.1} parent=31 // pred_check
          %p1122 = pneg %p107
        $region46: #{tpu_custom_call.1} parent=31 // pred_check_branch
          %1124 = sbr.rel (%p1122) target = $region48
        $region47: #{tpu_custom_call.1} parent=31 // pred_region
          %s1125 = smul.u32 4, %s21
          %s1127 = ssub.s32 64, 64
          %1128 = vsyncadd %s1118, %s1127
          %s1129 = smul.addr %s1125, 16
          %s1130 = scalar_lea.hbm %s3, %s1129
          %s1132 = sshll.u32 %s1121, 4
          %s1133 = int_to_ptr.vmem [resolvable:$true] %s1132
          %1135 = dma.vmem_to_hbm [thread:$0]  %s1133, 64, %s1130, %s1118
        $region48: #{tpu_custom_call.1} parent=31 // pred_fallthru
          _
      $region32: #{tpu_custom_call.1} parent=5 // pred_fallthru
        _
      %p1136 = scmp.le.s32.totalorder 2, %s16
      // Predicated region
      $region49: #{tpu_custom_call.1} parent=5 // pred_check
        %p1137 = pneg %p1136
      $region50: #{tpu_custom_call.1} parent=5 // pred_check_branch
        %1139 = sbr.rel (%p1137) target = $region52
      $region51: #{tpu_custom_call.1} parent=5 // pred_region
        %s1140 = ssub.s32 %s16, 2
        // Predicated region
        $region53: #{tpu_custom_call.1} parent=51 // pred_check
          %p1141 = pneg %p113
        $region54: #{tpu_custom_call.1} parent=51 // pred_check_branch
          %1143 = sbr.rel (%p1141) target = $region56
        $region55: #{tpu_custom_call.1} parent=51 // pred_region
          %s1144 = sand.u32 %s98, 1
          %s1145 = scalar_lea.sflag [#allocation4], %s1144
          %s1146 = sand.u32 %s98, 1
          %s1147 = smul.addr %s1146, 4
          %s1148 = scalar_lea.vmem [#allocation8], %s1147
          %1149 = dma.done %s1145, 64
        $region56: #{tpu_custom_call.1} parent=51 // pred_fallthru
          _
      $region52: #{tpu_custom_call.1} parent=5 // pred_fallthru
        _
    $region6: #{tpu_custom_call.1} parent=1 // loop_footer
      %s20 = sadd.s32 1, %s16
    $region7: #{tpu_custom_call.1} parent=1 // loop_footer_branch
      %15 = sbr.rel target = $region3
    $region8: #{tpu_custom_call.1} parent=1 // loop_exit
      _
    %1150 = vsyncpa [#allocation3], 1
    %s1151 = scalar_lea.sflag [#allocation3], 1
    %1152 = vsyncpa %s1151, 1
    %1153 = vsyncpa [#allocation6], 1
    %1154 = vsyncpa [#allocation4], 1
    %s1155 = scalar_lea.sflag [#allocation4], 1
    %1156 = vsyncpa %s1155, 1

</llo_original>
